<compile_context>
chip_gen: v7x
topology: tpu7x:2x2x1
jax: 0.10.0
libtpu: 0.0.40
codegen_flags: <defaults>
</compile_context>

<pallas_src>
import functools

import jax
import jax.numpy as jnp
from jax import lax
from jax.experimental import pallas as pl
from jax.experimental.pallas import tpu as pltpu

_LANES = 128


def _round_up(n, m):
    return (n + m - 1) // m * m


# ----------------------------- kernel bodies -----------------------------

def _feat_kernel(x_ref, w_ref, out_ref):
    # support1_tile = x_tile @ W1   (bf16 operands, f32 MXU accumulation, bf16 store)
    out_ref[...] = jnp.dot(
        x_ref[...], w_ref[...], preferred_element_type=jnp.float32
    ).astype(out_ref.dtype)


def _gc1_kernel(adj_ref, sup_ref, w23_ref, hid_ref, t_ref):
    # hidden_tile = relu(adj_tile @ support1)        (gc1 aggregate + ReLU)
    hid = jnp.maximum(
        jnp.dot(adj_ref[...], sup_ref[...], preferred_element_type=jnp.float32), 0.0)
    hid_ref[...] = hid
    # fused gc2/gc3 feature transform for this row tile: t_tile = hidden_tile @ [W2|W3]
    t_ref[...] = jnp.dot(
        hid.astype(jnp.bfloat16), w23_ref[...], preferred_element_type=jnp.float32
    ).astype(t_ref.dtype)


def _gc2_kernel(adj_ref, t_ref, mulv_ref, z_ref, *, h2):
    # [mu|logvar]_tile = adj_tile @ t     (gc2 + gc3 aggregate, identity activation)
    mulv = jnp.dot(adj_ref[...], t_ref[...], preferred_element_type=jnp.float32)
    mulv_ref[...] = mulv
    # eval-mode reparameterize: z = mu.  Emit z already lane-padded (cols >= h2
    # zeroed) and in bf16 so the decoder can contract over the full 128-lane slab.
    col = lax.broadcasted_iota(jnp.int32, mulv.shape, 1)
    z_ref[...] = jnp.where(col < h2, mulv, 0.0).astype(z_ref.dtype)


def _decoder_kernel(zt_ref, zf_ref, rec_ref):
    # rec_tile = z_tile @ z_full.T, contracting the last dims of both operands so no
    # transposed copy of z is materialized.
    # TODO(synk): verify via pl.lower_as_mlir that this does not lower to a per-tile
    # vxpose; if it does, pre-transpose z once into a tiny (128, N_pad) buffer.
    rec_ref[...] = lax.dot_general(
        zt_ref[...], zf_ref[...],
        dimension_numbers=(((1,), (1,)), ((), ())),
        preferred_element_type=jnp.float32)


# ------------------------------- wrapper ---------------------------------

def prepare_vgae_params(w1, w2, w3):
    """One-time parameter prep (hoist out of the per-forward path):
    fuse gc2/gc3 weights into [W2|W3] and zero-pad feature dims to 128 lanes."""
    f, h1 = w1.shape
    h2 = w2.shape[1]
    h1p = _round_up(h1, _LANES)
    h23p = _round_up(2 * h2, _LANES)
    bf16 = jnp.bfloat16
    w1p = jnp.zeros((f, h1p), bf16).at[:, :h1].set(w1.astype(bf16))
    w23 = jnp.concatenate([w2, w3], axis=1)
    w23p = jnp.zeros((h1p, h23p), bf16).at[:h1, :2 * h2].set(w23.astype(bf16))
    return w1p, w23p, (int(h1), int(h2))


def vgae_forward(x, adj, params, row_tile=128):
    # row_tile: multiple of 16; 256-512 is a better choice at realistic graph sizes
    # (v5e/v6e), ~256 on v7x (64 MiB VMEM).  128 keeps the demo multi-tile.
    w1p, w23p, (h1, h2) = params
    n, f = x.shape
    h1p, h23p = w1p.shape[1], w23p.shape[1]
    bf16, f32 = jnp.bfloat16, jnp.float32

    tm = row_tile
    n_pad = _round_up(n, tm)
    nt = n_pad // tm

    # bf16 inputs prepared outside the kernels; zero-pad rows/cols so every tile is full.
    x_p = jnp.zeros((n_pad, f), bf16).at[:n].set(x.astype(bf16))
    adj_p = jnp.zeros((n_pad, n_pad), bf16).at[:n, :n].set(adj.astype(bf16))

    par = pltpu.CompilerParams(dimension_semantics=("parallel",))

    def row_spec(width):          # row-tiled operand / output
        return pl.BlockSpec((tm, width), lambda i: (i, 0))

    def resident(a):              # full array, constant block index -> DMA'd once
        return pl.BlockSpec(a.shape, lambda i: (0, 0))

    # --- call 0: support1 = x @ W1 (gc1 feature transform) -------------------------
    support1 = pl.pallas_call(
        _feat_kernel,
        out_shape=jax.ShapeDtypeStruct((n_pad, h1p), bf16),
        grid_spec=pl.GridSpec(
            grid=(nt,),
            in_specs=[row_spec(f), resident(w1p)],
            out_specs=row_spec(h1p)),
        compiler_params=par,
    )(x_p, w1p)

    # --- call 1: hidden = relu(adj @ support1) ; t = hidden @ [W2|W3] ---------------
    hidden_p, t_p = pl.pallas_call(
        _gc1_kernel,
        out_shape=(jax.ShapeDtypeStruct((n_pad, h1p), f32),
                   jax.ShapeDtypeStruct((n_pad, h23p), bf16)),
        grid_spec=pl.GridSpec(
            grid=(nt,),
            in_specs=[row_spec(n_pad), resident(support1), resident(w23p)],
            out_specs=(row_spec(h1p), row_spec(h23p))),
        compiler_params=par,
    )(adj_p, support1, w23p)

    # --- call 2: [mu|logvar] = adj @ t ; z = mu (masked, bf16) ----------------------
    mulv_p, z_p = pl.pallas_call(
        functools.partial(_gc2_kernel, h2=h2),
        out_shape=(jax.ShapeDtypeStruct((n_pad, h23p), f32),
                   jax.ShapeDtypeStruct((n_pad, h23p), bf16)),
        grid_spec=pl.GridSpec(
            grid=(nt,),
            in_specs=[row_spec(n_pad), resident(t_p)],
            out_specs=(row_spec(h23p), row_spec(h23p))),
        compiler_params=par,
    )(adj_p, t_p)

    # --- call 3: adj_rec = z @ z.T (InnerProductDecoder, identity activation) -------
    rec_p = pl.pallas_call(
        _decoder_kernel,
        out_shape=jax.ShapeDtypeStruct((n_pad, n_pad), f32),
        grid_spec=pl.GridSpec(
            grid=(nt,),
            in_specs=[row_spec(h23p), resident(z_p)],
            out_specs=row_spec(n_pad)),
        compiler_params=par,
    )(z_p, z_p)

    hidden = hidden_p[:n, :h1]
    mu = mulv_p[:n, :h2]
    logvar = mulv_p[:n, h2:2 * h2]
    z = mu                      # eval-mode reparameterize
    adj_rec = rec_p[:n, :n]
    return hidden, adj_rec, mu, logvar, z


# ------------------------------ reference --------------------------------

def _ref_forward(x, adj, w1, w2, w3):
    # Pure-JAX reference mirroring the kernel's bf16-operand / f32-accumulation chain.
    bf16, f32 = jnp.bfloat16, jnp.float32
    xb, ab, w1b = x.astype(bf16), adj.astype(bf16), w1.astype(bf16)
    w23b = jnp.concatenate([w2, w3], axis=1).astype(bf16)
    s1 = jnp.dot(xb, w1b, preferred_element_type=f32).astype(bf16)
    hidden = jnp.maximum(jnp.dot(ab, s1, preferred_element_type=f32), 0.0)
    t = jnp.dot(hidden.astype(bf16), w23b, preferred_element_type=f32).astype(bf16)
    mulv = jnp.dot(ab, t, preferred_element_type=f32)
    h2 = w2.shape[1]
    mu, logvar = mulv[:, :h2], mulv[:, h2:]
    z = mu
    zb = mu.astype(bf16)
    rec = jnp.dot(zb, zb.T, preferred_element_type=f32)
    return hidden, rec, mu, logvar, z


def _glorot(key, shape):
    fan_in, fan_out = shape
    limit = jnp.sqrt(6.0 / (fan_in + fan_out))
    return jax.random.uniform(key, shape, jnp.float32, -limit, limit)


if __name__ == "__main__":
    key = jax.random.PRNGKey(0)
    k_x, k_a, k_w1, k_w2, k_w3 = jax.random.split(key, 5)

    N = 200   # number of graph nodes (not a tile multiple -> exercises padding path)
    F = 48    # input_feat_dim
    H1 = 32   # hidden_dim1
    H2 = 16   # hidden_dim2

    x = jax.random.normal(k_x, (N, F), jnp.float32)

    # symmetric, self-looped, row-normalized dense adjacency
    a = (jax.random.uniform(k_a, (N, N)) > 0.9).astype(jnp.float32)
    a = jnp.maximum(a, a.T) + jnp.eye(N, dtype=jnp.float32)
    adj = a / jnp.sum(a, axis=1, keepdims=True)

    w1 = _glorot(k_w1, (F, H1))
    w2 = _glorot(k_w2, (H1, H2))
    w3 = _glorot(k_w3, (H1, H2))

    params = prepare_vgae_params(w1, w2, w3)        # one-time weight fuse/pad
    outs = vgae_forward(x, adj, params, row_tile=128)
    jax.block_until_ready(outs)

    refs = _ref_forward(x, adj, w1, w2, w3)
    for name, got, ref in zip(("hidden", "adj_rec", "mu", "logvar", "z"), outs, refs):
        assert got.shape == ref.shape, f"{name} shape mismatch"
        assert jnp.allclose(got, ref, atol=2e-2), f"{name} mismatch"

    print("KERNEL_OK")
</pallas_src>

<mosaic_0001>
module attributes {stable_mosaic.version = 11 : i64} {
  func.func @_feat_kernel(%arg0: i32, %arg1: memref<128x48xbf16, #tpu.memory_space<vmem>>, %arg2: memref<48x128xbf16, #tpu.memory_space<vmem>>, %arg3: memref<128x128xbf16, #tpu.memory_space<vmem>>) attributes {dimension_semantics = [#tpu.dimension_semantics<parallel>], iteration_bounds = array<i64: 2>, scalar_prefetch = 0 : i64, scratch_operands = 0 : i64, tpu.core_type = #tpu.core_type<tc>, window_params = [{transform_indices = @transform_0, window_bounds = array<i64: 128, 48>}, {pipeline_mode = #tpu.pipeline_mode<synchronous>, transform_indices = @transform_1, window_bounds = array<i64: 48, 128>}, {transform_indices = @transform_2, window_bounds = array<i64: 128, 128>}]} {
    %c0 = arith.constant 0 : index
    %c0_0 = arith.constant 0 : index
    %0 = vector.load %arg1[%c0, %c0_0] : memref<128x48xbf16, #tpu.memory_space<vmem>>, vector<128x48xbf16>
    %c0_1 = arith.constant 0 : index
    %c0_2 = arith.constant 0 : index
    %1 = vector.load %arg2[%c0_1, %c0_2] : memref<48x128xbf16, #tpu.memory_space<vmem>>, vector<48x128xbf16>
    %cst = arith.constant dense<0.000000e+00> : vector<128x128xf32>
    %2 = tpu.matmul %0, %1, %cst {dimension_numbers = #tpu.dot_dimension_numbers<[1], [0], [0], [1], [0, 0, 1, 1], [], []>} : vector<128x48xbf16>, vector<48x128xbf16>, vector<128x128xf32> -> vector<128x128xf32>
    %3 = arith.truncf %2 : vector<128x128xf32> to vector<128x128xbf16>
    %c0_3 = arith.constant 0 : index
    %c0_4 = arith.constant 0 : index
    %4 = vector.load %arg3[%c0_3, %c0_4] : memref<128x128xbf16, #tpu.memory_space<vmem>>, vector<128x128xbf16>
    tpu.vector_store %arg3[%c0_3, %c0_4], %3 {strides = array<i32>} : memref<128x128xbf16, #tpu.memory_space<vmem>>, vector<128x128xbf16>,
    return
  }
  func.func @transform_0(%arg0: i32) -> (i32, i32) {
    %c0_i32 = arith.constant 0 : i32
    %c0_i32_0 = arith.constant 0 : i32
    return %arg0, %c0_i32 : i32, i32
  }
  func.func @transform_1(%arg0: i32) -> (i32, i32) {
    %c0_i32 = arith.constant 0 : i32
    %c0_i32_0 = arith.constant 0 : i32
    %c0_i32_1 = arith.constant 0 : i32
    return %c0_i32, %c0_i32_0 : i32, i32
  }
  func.func @transform_2(%arg0: i32) -> (i32, i32) {
    %c0_i32 = arith.constant 0 : i32
    %c0_i32_0 = arith.constant 0 : i32
    return %arg0, %c0_i32 : i32, i32
  }
}

</mosaic_0001>

<llo_original>
// kernel: tpu_custom_call.1
$region0: #{tpu_custom_call.1}
  #allocation0 [shape = 'u32[]', space=smem, size = 0x4, offset = 0x4, fixed_abs, tag = 'smem constant byte address 0x4 - core index']
  #allocation1 [shape = 'u32[144,128]{1,0:T(1,128)}', space=vmem, size = 0x12000, scoped, tag = 'internal scratch']
  %s0 = inlined_call_operand.vmem [shape: bf16[256,48], index: 0, kind: input, shape index: {}]
  %s1 = inlined_call_operand.vmem [shape: bf16[48,128], index: 1, kind: input, shape index: {}]
  %s2 = inlined_call_operand.hbm [shape: bf16[256,128], index: 2, kind: output, shape index: {}]
  %s3 = sld [smem:[#allocation0]]
  $region41: #{tpu_custom_call.1} parent=0
    _
  %s5 = ssub.s32 1, %s3
  %s6 = scalar_select 0, %s5, %s3
  $region1: #{tpu_custom_call.1} parent=0
    #allocation2 [shape = 'u8[65536]{0}', space=vmem, size = 0x10000, scoped, tag = 'output window, operand 0']
    #allocation3 [shape = 's32[2]{0}', space=sflag, size = 0x8, scoped, tag = 'scoped memory for tpu_custom_call.1']
    %7 = vsyncpa [#allocation3], 0
    %s8 = scalar_lea.sflag [#allocation3], 1
    %9 = vsyncpa %s8, 0
    loop: start=0, step=1, limit=4
    $region2: #{tpu_custom_call.1} parent=1 // loop_pre_header
      _
    $region3: #{tpu_custom_call.1} parent=1 // loop_header
      %s11 = sphi 0, %s15
      %p12 = scmp.ge.s32.totalorder %s11, 4
      %s21 = sphi 0, %s23
      %s24 = sphi 0, %s21
      %s25 = sphi 0, %s24
      %s41 = sphi 0, %s25
      %s45 = sphi 0, %s45
      %s47 = sphi 0, %s45
      %s48 = sphi 0, %s47
      %s62 = sphi 0, %s48
      %s68 = sphi 0, %s70
      %s71 = sphi 0, %s68
      %s72 = sphi 0, %s71
      %s88 = sphi 0, %s72
    $region4: #{tpu_custom_call.1} parent=1 // loop_header_branch
      %14 = sbr.rel (%p12) target = $region8
    $region5: #{tpu_custom_call.1} parent=1 // loop_body
      %s16 = ssub.s32 %s11, 1
      %s17 = ssub.s32 %s11, 2
      %s18 = sadd.s32 %s11, 1
      %s19 = ssub.s32 %s11, %s18
      %p20 = scmp.eq.s32.totalorder %s19, 0
      %s22 = sadd.s32 %s21, 1
      %s23 = scalar_select %p20, %s21, %s22
      %p26 = pneg %p20
      %p27 = scmp.eq.s32.totalorder %s11, 1
      %p28 = por %p26, %p27
      %p29 = scmp.ne.s32.totalorder %s21, %s24
      %p30 = scmp.eq.s32.totalorder %s11, 0
      %p31 = por %p29, %p30
      %p32 = scmp.ne.s32.totalorder %s21, %s24
      %p33 = scmp.eq.s32.totalorder %s16, 1
      %p34 = por %p32, %p33
      %p35 = scmp.ne.s32.totalorder %s24, %s25
      %p36 = scmp.eq.s32.totalorder %s16, 0
      %p37 = por %p35, %p36
      %p38 = scmp.ne.s32.totalorder %s24, %s25
      %p39 = scmp.eq.s32.totalorder %s17, 1
      %p40 = por %p38, %p39
      %p42 = scmp.ne.s32.totalorder %s25, %s41
      %p43 = scmp.eq.s32.totalorder %s17, 0
      %p44 = por %p42, %p43
      %s46 = sadd.s32 %s45, 1
      %p49 = scmp.eq.s32.totalorder %s11, 1
      %p50 = scmp.ne.s32.totalorder %s45, %s47
      %p51 = scmp.eq.s32.totalorder %s11, 0
      %p52 = por %p50, %p51
      %p53 = scmp.ne.s32.totalorder %s45, %s47
      %p54 = scmp.eq.s32.totalorder %s16, 1
      %p55 = por %p53, %p54
      %p56 = scmp.ne.s32.totalorder %s47, %s48
      %p57 = scmp.eq.s32.totalorder %s16, 0
      %p58 = por %p56, %p57
      %p59 = scmp.ne.s32.totalorder %s47, %s48
      %p60 = scmp.eq.s32.totalorder %s17, 1
      %p61 = por %p59, %p60
      %p63 = scmp.ne.s32.totalorder %s48, %s62
      %p64 = scmp.eq.s32.totalorder %s17, 0
      %p65 = por %p63, %p64
      %s66 = ssub.s32 %s11, %s18
      %p67 = scmp.eq.s32.totalorder %s66, 0
      %s69 = sadd.s32 %s68, 1
      %s70 = scalar_select %p67, %s68, %s69
      %p73 = pneg %p67
      %p74 = scmp.eq.s32.totalorder %s11, 1
      %p75 = por %p73, %p74
      %p76 = scmp.ne.s32.totalorder %s68, %s71
      %p77 = scmp.eq.s32.totalorder %s11, 0
      %p78 = por %p76, %p77
      %p79 = scmp.ne.s32.totalorder %s68, %s71
      %p80 = scmp.eq.s32.totalorder %s16, 1
      %p81 = por %p79, %p80
      %p82 = scmp.ne.s32.totalorder %s71, %s72
      %p83 = scmp.eq.s32.totalorder %s16, 0
      %p84 = por %p82, %p83
      %p85 = scmp.ne.s32.totalorder %s71, %s72
      %p86 = scmp.eq.s32.totalorder %s17, 1
      %p87 = por %p85, %p86
      %p89 = scmp.ne.s32.totalorder %s72, %s88
      %p90 = scmp.eq.s32.totalorder %s17, 0
      %p91 = por %p89, %p90
      %p92 = scmp.le.s32.totalorder 1, %s11
      %p93 = scmp.lt.s32.totalorder %s11, 3
      %p94 = pnand %p92, %p93
      %p95 = pneg %p94
      // Predicated region
      $region9: #{tpu_custom_call.1} parent=5 // pred_check
        _
      $region10: #{tpu_custom_call.1} parent=5 // pred_check_branch
        %97 = sbr.rel (%p94) target = $region12
      $region11: #{tpu_custom_call.1} parent=5 // pred_region
        %s98 = ssub.s32 %s11, 1
        // Predicated region
        $region13: #{tpu_custom_call.1} parent=11 // pred_check
          %p99 = pneg %p58
        $region14: #{tpu_custom_call.1} parent=11 // pred_check_branch
          %101 = sbr.rel (%p99) target = $region16
        $region15: #{tpu_custom_call.1} parent=11 // pred_region
          _
        $region16: #{tpu_custom_call.1} parent=11 // pred_fallthru
          _
      $region12: #{tpu_custom_call.1} parent=5 // pred_fallthru
        _
      %p102 = scmp.lt.s32.totalorder %s11, 2
      // Predicated region
      $region17: #{tpu_custom_call.1} parent=5 // pred_check
        %p103 = pneg %p102
      $region18: #{tpu_custom_call.1} parent=5 // pred_check_branch
        %105 = sbr.rel (%p103) target = $region20
      $region19: #{tpu_custom_call.1} parent=5 // pred_region
        // Predicated region
        $region21: #{tpu_custom_call.1} parent=19 // pred_check
          %p106 = pneg %p31
        $region22: #{tpu_custom_call.1} parent=19 // pred_check_branch
          %108 = sbr.rel (%p106) target = $region24
        $region23: #{tpu_custom_call.1} parent=19 // pred_region
          %s109 = smul.u32 16, %s11
          %p110 = scmp.lt.s32.totalorder %s109, 31
          %s111 = scalar_select %p110, %s109, 31
          %s112 = smul.addr %s111, 4
          %s113 = scalar_lea.vmem %s0, %s112
          %s114 = smul.u32 16, %s11
        $region24: #{tpu_custom_call.1} parent=19 // pred_fallthru
          _
      $region20: #{tpu_custom_call.1} parent=5 // pred_fallthru
        _
      %p115 = scmp.le.s32.totalorder 1, %s11
      %p116 = scmp.lt.s32.totalorder %s11, 3
      %p117 = pnand %p115, %p116
      %p118 = pneg %p117
      // Predicated region
      $region25: #{tpu_custom_call.1} parent=5 // pred_check
        _
      $region26: #{tpu_custom_call.1} parent=5 // pred_check_branch
        %120 = sbr.rel (%p117) target = $region28
      $region27: #{tpu_custom_call.1} parent=5 // pred_region
        %s121 = ssub.s32 %s11, 1
        %s122 = smul.u32 16, %s16
        %p123 = scmp.lt.s32.totalorder %s122, 31
        %s124 = scalar_select %p123, %s122, 31
        %s125 = smul.addr %s124, 4
        %s126 = scalar_lea.vmem %s0, %s125
        %p127 = pneg %p37
        %p128 = pneg %p34
        %p129 = pneg %p58
        %p130 = pneg %p55
        %p131 = pneg %p84
        %p132 = pneg %p81
        %s133 = sand.u32 %s71, 1
        %s134 = scalar_lea.sflag [#allocation3], %s133
        %s135 = sand.u32 %s71, 1
        %s136 = smul.addr %s135, 64
        %s137 = scalar_lea.vmem [#allocation2], %s136
        %s138 = smul.u32 16, %s16
        %p139 = scmp.lt.s32.totalorder %s138, 31
        %s140 = scalar_select %p139, %s138, 31
        %s141 = smul.addr %s140, 4
        %s142 = scalar_lea.vmem %s0, %s141
        %s143 = smul.u32 16, %s16
        %s144 = smul.u32 16, %s16
        %v146 = vld [vmem:[%s142] sm:$0xf]
        %v147 = vld [vmem:[%s142 + $0x4] sm:$0xf]
        %v148 = vld [vmem:[%s142 + $0x8] sm:$0xf]
        %v149 = vld [vmem:[%s142 + $0xc] sm:$0xf]
        %v150 = vld [vmem:[%s142 + $0x10] sm:$0xf]
        %v151 = vld [vmem:[%s142 + $0x14] sm:$0xf]
        %v152 = vld [vmem:[%s142 + $0x18] sm:$0xf]
        %v153 = vld [vmem:[%s142 + $0x1c] sm:$0xf]
        %v154 = vld [vmem:[%s142 + $0x20] sm:$0xf]
        %v155 = vld [vmem:[%s142 + $0x24] sm:$0xf]
        %v156 = vld [vmem:[%s142 + $0x28] sm:$0xf]
        %v157 = vld [vmem:[%s142 + $0x2c] sm:$0xf]
        %v158 = vld [vmem:[%s142 + $0x30] sm:$0xf]
        %v159 = vld [vmem:[%s142 + $0x34] sm:$0xf]
        %v160 = vld [vmem:[%s142 + $0x38] sm:$0xf]
        %v161 = vld [vmem:[%s142 + $0x3c] sm:$0xf]
        %v162 = vld [vmem:[%s1] sm:$0xf]
        %v163 = vld [vmem:[%s1 + $0x4] sm:$0xf]
        %v164 = vld [vmem:[%s1 + $0x8] sm:$0xf]
        %v165 = vld [vmem:[%s1 + $0xc] sm:$0xf]
        %v166 = vld [vmem:[%s1 + $0x10] sm:$0xf]
        %v167 = vld [vmem:[%s1 + $0x14] sm:$0xf]
        %v184 = vunpack.c.l.b16 %v146
        %v185 = vunpack.c.l.b16 %v147
        %v186 = vunpack.c.l.b16 %v148
        %v187 = vunpack.c.l.b16 %v149
        %v188 = vunpack.c.l.b16 %v150
        %v189 = vunpack.c.l.b16 %v151
        %v190 = vunpack.c.l.b16 %v152
        %v191 = vunpack.c.l.b16 %v153
        %v192 = vunpack.c.l.b16 %v154
        %v193 = vunpack.c.l.b16 %v155
        %v194 = vunpack.c.l.b16 %v156
        %v195 = vunpack.c.l.b16 %v157
        %v196 = vunpack.c.l.b16 %v158
        %v197 = vunpack.c.l.b16 %v159
        %v198 = vunpack.c.l.b16 %v160
        %v199 = vunpack.c.l.b16 %v161
        %v200 = vpack.c.b16 %v185, %v184
        %v201 = vpack.c.b16 %v187, %v186
        %v202 = vpack.c.b16 %v189, %v188
        %v203 = vpack.c.b16 %v191, %v190
        %v204 = vpack.c.b16 %v193, %v192
        %v205 = vpack.c.b16 %v195, %v194
        %v206 = vpack.c.b16 %v197, %v196
        %v207 = vpack.c.b16 %v199, %v198
        %v214 = vunpack.c.l.b16 %v162
        %v215 = vunpack.c.l.b16 %v163
        %v216 = vunpack.c.l.b16 %v164
        %v217 = vunpack.c.l.b16 %v165
        %v218 = vunpack.c.l.b16 %v166
        %v219 = vunpack.c.l.b16 %v167
        %v220 = vpack.c.b16 %v215, %v214
        %v221 = vpack.c.b16 %v217, %v216
        %v222 = vpack.c.b16 %v219, %v218
        %vm226 = vcmask 392192
        %v228 = vsel %vm226, %v200, 0
        %v231 = vsel %vm226, %v201, 0
        %v234 = vsel %vm226, %v202, 0
        %v237 = vsel %vm226, %v203, 0
        %v240 = vsel %vm226, %v204, 0
        %v243 = vsel %vm226, %v205, 0
        %v246 = vsel %vm226, %v206, 0
        %v249 = vsel %vm226, %v207, 0
        %251 = vmatprep.subr.bf16.mxu0 0
        %252 = vmatpush1.bf16.msra.mxu0 %v220
        %253 = vmatprep.subr.bf16.mxu0 0
        %254 = vmatpush1.bf16.msra.mxu0 %v221
        %255 = vmatprep.subr.bf16.mxu0 0
        %256 = vmatpush1.bf16.msra.mxu0 %v222
        %257 = vmatprep.subr.bf16.mxu0 0
        %258 = vmatpush1.bf16.msra.mxu0 0
        %259 = vmatprep.subr.bf16.mxu0 0
        %260 = vmatpush1.bf16.msra.mxu0 0
        %261 = vmatprep.subr.bf16.mxu0 0
        %262 = vmatpush1.bf16.msra.mxu0 0
        %263 = vmatprep.subr.bf16.mxu0 0
        %264 = vmatpush1.bf16.msra.mxu0 0
        %265 = vmatprep.subr.bf16.mxu0 0
        %266 = vmatpush1.bf16.msra.mxu0 0
        %267 = vmatprep.subr.bf16.mxu0 0
        %268 = vmatpush1.bf16.msra.mxu0 0
        %269 = vmatprep.subr.bf16.mxu0 0
        %270 = vmatpush1.bf16.msra.mxu0 0
        %271 = vmatprep.subr.bf16.mxu0 0
        %272 = vmatpush1.bf16.msra.mxu0 0
        %273 = vmatprep.subr.bf16.mxu0 0
        %274 = vmatpush1.bf16.msra.mxu0 0
        %275 = vmatprep.subr.bf16.mxu0 0
        %276 = vmatpush1.bf16.msra.mxu0 0
        %277 = vmatprep.subr.bf16.mxu0 0
        %278 = vmatpush1.bf16.msra.mxu0 0
        %279 = vmatprep.subr.bf16.mxu0 0
        %280 = vmatpush1.bf16.msra.mxu0 0
        %281 = vmatprep.subr.bf16.mxu0 0
        %282 = vmatpush1.bf16.msra.mxu0 0
        %283 = vmatprep.mubr.bf16.mxu0 0
        %284 = vmatmul.mubr.bf16.gmra.mrb[0].mxu0 %v228
        %v285 = vpop.f32.mrb[0].mxu0
        %v286 = vadd.f32 0.0, %v285
        %v287 = vpop.f32.mrb[0].mxu0
        %v288 = vpop.f32.mrb[0].mxu0
        %v289 = vadd.f32 0.0, %v288
        %v290 = vpop.f32.mrb[0].mxu0
        %291 = vmatprep.mubr.bf16.mxu0 0
        %292 = vmatmul.mubr.bf16.gmra.mrb[0].mxu0 %v231
        %v293 = vpop.f32.mrb[0].mxu0
        %v294 = vadd.f32 0.0, %v293
        %v295 = vpop.f32.mrb[0].mxu0
        %v296 = vpop.f32.mrb[0].mxu0
        %v297 = vadd.f32 0.0, %v296
        %v298 = vpop.f32.mrb[0].mxu0
        %299 = vmatprep.mubr.bf16.mxu0 0
        %300 = vmatmul.mubr.bf16.gmra.mrb[0].mxu0 %v234
        %v301 = vpop.f32.mrb[0].mxu0
        %v302 = vadd.f32 0.0, %v301
        %v303 = vpop.f32.mrb[0].mxu0
        %v304 = vpop.f32.mrb[0].mxu0
        %v305 = vadd.f32 0.0, %v304
        %v306 = vpop.f32.mrb[0].mxu0
        %307 = vmatprep.mubr.bf16.mxu0 0
        %308 = vmatmul.mubr.bf16.gmra.mrb[0].mxu0 %v237
        %v309 = vpop.f32.mrb[0].mxu0
        %v310 = vadd.f32 0.0, %v309
        %v311 = vpop.f32.mrb[0].mxu0
        %v312 = vpop.f32.mrb[0].mxu0
        %v313 = vadd.f32 0.0, %v312
        %v314 = vpop.f32.mrb[0].mxu0
        %315 = vmatprep.mubr.bf16.mxu0 0
        %316 = vmatmul.mubr.bf16.gmra.mrb[0].mxu0 %v240
        %v317 = vpop.f32.mrb[0].mxu0
        %v318 = vadd.f32 0.0, %v317
        %v319 = vpop.f32.mrb[0].mxu0
        %v320 = vpop.f32.mrb[0].mxu0
        %v321 = vadd.f32 0.0, %v320
        %v322 = vpop.f32.mrb[0].mxu0
        %323 = vmatprep.mubr.bf16.mxu0 0
        %324 = vmatmul.mubr.bf16.gmra.mrb[0].mxu0 %v243
        %v325 = vpop.f32.mrb[0].mxu0
        %v326 = vadd.f32 0.0, %v325
        %v327 = vpop.f32.mrb[0].mxu0
        %v328 = vpop.f32.mrb[0].mxu0
        %v329 = vadd.f32 0.0, %v328
        %v330 = vpop.f32.mrb[0].mxu0
        %331 = vmatprep.mubr.bf16.mxu0 0
        %332 = vmatmul.mubr.bf16.gmra.mrb[0].mxu0 %v246
        %v333 = vpop.f32.mrb[0].mxu0
        %v334 = vadd.f32 0.0, %v333
        %v335 = vpop.f32.mrb[0].mxu0
        %v336 = vpop.f32.mrb[0].mxu0
        %v337 = vadd.f32 0.0, %v336
        %v338 = vpop.f32.mrb[0].mxu0
        %339 = vmatprep.mubr.bf16.mxu0 0
        %340 = vmatmul.mubr.bf16.gmra.mrb[0].mxu0 %v249
        %v341 = vpop.f32.mrb[0].mxu0
        %v342 = vadd.f32 0.0, %v341
        %v343 = vpop.f32.mrb[0].mxu0
        %v344 = vpop.f32.mrb[0].mxu0
        %v345 = vadd.f32 0.0, %v344
        %v346 = vpop.f32.mrb[0].mxu0
        %347 = vdwg.mxu0
        %v348 = vpack.c.bf16 %v289, %v286
        %v349 = vpack.c.bf16 %v297, %v294
        %v350 = vpack.c.bf16 %v305, %v302
        %v351 = vpack.c.bf16 %v313, %v310
        %v352 = vpack.c.bf16 %v321, %v318
        %v353 = vpack.c.bf16 %v329, %v326
        %v354 = vpack.c.bf16 %v337, %v334
        %v355 = vpack.c.bf16 %v345, %v342
        %v364 = vunpack.c.l.b16 %v348
        %v365 = vunpack.c.h.b16 %v348
        %v366 = vunpack.c.l.b16 %v349
        %v367 = vunpack.c.h.b16 %v349
        %v368 = vunpack.c.l.b16 %v350
        %v369 = vunpack.c.h.b16 %v350
        %v370 = vunpack.c.l.b16 %v351
        %v371 = vunpack.c.h.b16 %v351
        %v372 = vunpack.c.l.b16 %v352
        %v373 = vunpack.c.h.b16 %v352
        %v374 = vunpack.c.l.b16 %v353
        %v375 = vunpack.c.h.b16 %v353
        %v376 = vunpack.c.l.b16 %v354
        %v377 = vunpack.c.h.b16 %v354
        %v378 = vunpack.c.l.b16 %v355
        %v379 = vunpack.c.h.b16 %v355
        %v380 = vpack.c.b16 %v364, %v364
        %v381 = vpack.c.b16 %v365, %v365
        %v382 = vpack.c.b16 %v366, %v366
        %v383 = vpack.c.b16 %v367, %v367
        %v384 = vpack.c.b16 %v368, %v368
        %v385 = vpack.c.b16 %v369, %v369
        %v386 = vpack.c.b16 %v370, %v370
        %v387 = vpack.c.b16 %v371, %v371
        %v388 = vpack.c.b16 %v372, %v372
        %v389 = vpack.c.b16 %v373, %v373
        %v390 = vpack.c.b16 %v374, %v374
        %v391 = vpack.c.b16 %v375, %v375
        %v392 = vpack.c.b16 %v376, %v376
        %v393 = vpack.c.b16 %v377, %v377
        %v394 = vpack.c.b16 %v378, %v378
        %v395 = vpack.c.b16 %v379, %v379
        %412 = vst [vmem:[%s137] sm:$0xf] %v380
        %413 = vst [vmem:[%s137 + $0x4] sm:$0xf] %v381
        %414 = vst [vmem:[%s137 + $0x8] sm:$0xf] %v382
        %415 = vst [vmem:[%s137 + $0xc] sm:$0xf] %v383
        %416 = vst [vmem:[%s137 + $0x10] sm:$0xf] %v384
        %417 = vst [vmem:[%s137 + $0x14] sm:$0xf] %v385
        %418 = vst [vmem:[%s137 + $0x18] sm:$0xf] %v386
        %419 = vst [vmem:[%s137 + $0x1c] sm:$0xf] %v387
        %420 = vst [vmem:[%s137 + $0x20] sm:$0xf] %v388
        %421 = vst [vmem:[%s137 + $0x24] sm:$0xf] %v389
        %422 = vst [vmem:[%s137 + $0x28] sm:$0xf] %v390
        %423 = vst [vmem:[%s137 + $0x2c] sm:$0xf] %v391
        %424 = vst [vmem:[%s137 + $0x30] sm:$0xf] %v392
        %425 = vst [vmem:[%s137 + $0x34] sm:$0xf] %v393
        %426 = vst [vmem:[%s137 + $0x38] sm:$0xf] %v394
        %427 = vst [vmem:[%s137 + $0x3c] sm:$0xf] %v395
        %s428 = sand.u32 %s71, 1
        %s429 = scalar_lea.sflag [#allocation3], %s428
        %s430 = sand.u32 %s71, 1
        %s431 = smul.addr %s430, 64
        %s432 = scalar_lea.vmem [#allocation2], %s431
        // Predicated region
        $region29: #{tpu_custom_call.1} parent=27 // pred_check
          %p433 = pneg %p81
        $region30: #{tpu_custom_call.1} parent=27 // pred_check_branch
          %435 = sbr.rel (%p433) target = $region32
        $region31: #{tpu_custom_call.1} parent=27 // pred_region
          %s436 = smul.u32 16, %s16
          %s438 = ssub.s32 1024, 1024
          %439 = vsyncadd %s429, %s438
          %s440 = smul.addr %s436, 64
          %s441 = scalar_lea.hbm %s2, %s440
          %s442 = sshll.u32 %s432, 4
          %s443 = int_to_ptr.vmem [resolvable:$true] %s442
          %448 = dma.vmem_to_hbm [thread:$0]  %s443, 1024, %s441, %s429, 64, 64, 4
        $region32: #{tpu_custom_call.1} parent=27 // pred_fallthru
          _
      $region28: #{tpu_custom_call.1} parent=5 // pred_fallthru
        _
      %p449 = scmp.le.s32.totalorder 2, %s11
      // Predicated region
      $region33: #{tpu_custom_call.1} parent=5 // pred_check
        %p450 = pneg %p449
      $region34: #{tpu_custom_call.1} parent=5 // pred_check_branch
        %452 = sbr.rel (%p450) target = $region36
      $region35: #{tpu_custom_call.1} parent=5 // pred_region
        %s453 = ssub.s32 %s11, 2
        // Predicated region
        $region37: #{tpu_custom_call.1} parent=35 // pred_check
          %p454 = pneg %p87
        $region38: #{tpu_custom_call.1} parent=35 // pred_check_branch
          %456 = sbr.rel (%p454) target = $region40
        $region39: #{tpu_custom_call.1} parent=35 // pred_region
          %s457 = sand.u32 %s72, 1
          %s458 = scalar_lea.sflag [#allocation3], %s457
          %s459 = sand.u32 %s72, 1
          %s460 = smul.addr %s459, 64
          %s461 = scalar_lea.vmem [#allocation2], %s460
          %462 = dma.done %s458, 1024
        $region40: #{tpu_custom_call.1} parent=35 // pred_fallthru
          _
      $region36: #{tpu_custom_call.1} parent=5 // pred_fallthru
        _
    $region6: #{tpu_custom_call.1} parent=1 // loop_footer
      %s15 = sadd.s32 1, %s11
    $region7: #{tpu_custom_call.1} parent=1 // loop_footer_branch
      %10 = sbr.rel target = $region3
    $region8: #{tpu_custom_call.1} parent=1 // loop_exit
      _
    %463 = vsyncpa [#allocation3], 1
    %s464 = scalar_lea.sflag [#allocation3], 1
    %465 = vsyncpa %s464, 1

</llo_original>
